<compile_context>
chip_gen: v7x
topology: tpu7x:2x2x1
jax: 0.10.0
libtpu: 0.0.40
codegen_flags: <defaults>
</compile_context>

<pallas_src>
import functools
import math

import jax
import jax.numpy as jnp
from jax import lax
from jax.experimental import pallas as pl
from jax.experimental.pallas import tpu as pltpu


def _mha_kernel(x_ref, w_qkv_ref, b_qkv_ref, attn_ref, out_ref, *,
                num_head, dim_k, dim_v, inv_sqrt_dim_k):
    H = num_head
    dk_h = dim_k // H
    dv_h = dim_v // H

    x = x_ref[0]                                                  # (S, D_in)

    # Single fused MXU matmul for Q|K|V (weights pre-transposed + concatenated
    # in the wrapper), followed by one fused bias add.
    qkv = jnp.dot(x, w_qkv_ref[...], preferred_element_type=jnp.float32)
    qkv = qkv + b_qkv_ref[...]                                    # (S, 2*dim_k+dim_v)

    # Static lane-slices (no relayout).  Scale Q here (S*dim_k elements)
    # instead of scaling the (S, S) score matrix.
    q = qkv[:, :dim_k] * inv_sqrt_dim_k                           # (S, dim_k)
    k = qkv[:, dim_k:2 * dim_k]                                   # (S, dim_k)
    v = qkv[:, 2 * dim_k:]                                        # (S, dim_v)

    attn_heads = []
    out_cols = []
    for h in range(H):                                            # small static loop
        qh = q[:, h * dk_h:(h + 1) * dk_h]                        # (S, dk_h)
        kh = k[:, h * dk_h:(h + 1) * dk_h]                        # (S, dk_h)
        vh = v[:, h * dv_h:(h + 1) * dv_h]                        # (S, dv_h)

        # scores = qh @ kh^T via transposed contraction (no materialized kh.T).
        s = lax.dot_general(qh, kh, (((1,), (1,)), ((), ())),
                            preferred_element_type=jnp.float32)   # (S, S)
        s = s - jnp.max(s, axis=-1, keepdims=True)
        p = jnp.exp(s)
        a = p * pl.reciprocal(jnp.sum(p, axis=-1, keepdims=True), approx=True)

        # Module returns the *transposed* softmax; transpose only for the store.
        attn_heads.append(a.T)                                    # (S, S)

        # a^T @ vh computed directly on the MXU (contract axis 0 with axis 0),
        # independent of the stored transpose above.
        out_cols.append(lax.dot_general(a, vh, (((0,), (0,)), ((), ())),
                                        preferred_element_type=jnp.float32))  # (S, dv_h)

    # Single full-tile stores (lane-dense on the output slab).
    attn_ref[0] = jnp.stack(attn_heads, axis=0)                   # (H, S, S)
    out_ref[0] = jnp.concatenate(out_cols, axis=-1)               # (S, dim_v)


def multi_head_attention(x, params, *, dim_k, dim_v, num_head):
    """x: (B, S, D_in) float32. Returns (attention (B,H,S,S), output (B,S,D_in))."""
    B, S, D_in = x.shape
    H = num_head
    dv_h = dim_v // H
    dim_qkv = 2 * dim_k + dim_v

    # Static parameter preprocessing (once, in the wrapper): transpose to (K, N)
    # orientation and fuse Q|K|V weights/biases into one slab each.
    w_qkv = jnp.concatenate(
        [params["wq"].T, params["wk"].T, params["wv"].T], axis=1)   # (D_in, dim_qkv)
    b_qkv = jnp.concatenate(
        [params["bq"], params["bk"], params["bv"]]).reshape(1, dim_qkv)

    kernel = functools.partial(
        _mha_kernel, num_head=H, dim_k=dim_k, dim_v=dim_v,
        inv_sqrt_dim_k=1.0 / math.sqrt(dim_k))

    const2 = lambda b: (0, 0)                 # resident-in-VMEM weight/bias blocks

    attn, out_cat = pl.pallas_call(
        kernel,
        out_shape=(
            jax.ShapeDtypeStruct((B, H, S, S), jnp.float32),
            jax.ShapeDtypeStruct((B, S, dim_v), jnp.float32),
        ),
        grid_spec=pltpu.PrefetchScalarGridSpec(
            num_scalar_prefetch=0,
            grid=(B,),
            in_specs=[
                pl.BlockSpec((1, S, D_in), lambda b: (b, 0, 0)),     # x
                pl.BlockSpec((D_in, dim_qkv), const2),               # [wq|wk|wv]^T
                pl.BlockSpec((1, dim_qkv), const2),                  # [bq|bk|bv]
            ],
            out_specs=[
                pl.BlockSpec((1, H, S, S), lambda b: (b, 0, 0, 0)),
                pl.BlockSpec((1, S, dim_v), lambda b: (b, 0, 0)),
            ],
        ),
        compiler_params=pltpu.CompilerParams(
            dimension_semantics=("parallel",)),
    )(x, w_qkv, b_qkv)

    # Kernel stores heads concatenated along lanes: (B, S, H*dv_h).  Rebuild the
    # exact PyTorch layout — (B, H, S, dv_h) raw-reshaped to (-1, S, D_in) with
    # heads interleaved, NOT permuted back (layout plumbing in plain JAX).
    out4 = out_cat.reshape(B, S, H, dv_h).transpose(0, 2, 1, 3)      # (B, H, S, dv_h)
    output = out4.reshape(-1, S, D_in)
    return attn, output


def _reference(x, params, *, dim_k, dim_v, num_head):
    """Pure-JAX replica of the PyTorch forward for verification."""
    B, S, D_in = x.shape
    H = num_head
    dk_h, dv_h = dim_k // H, dim_v // H
    q = x @ params["wq"].T + params["bq"]
    k = x @ params["wk"].T + params["bk"]
    v = x @ params["wv"].T + params["bv"]
    Q = q.reshape(B, S, H, dk_h).transpose(0, 2, 1, 3)
    K = k.reshape(B, S, H, dk_h).transpose(0, 2, 1, 3)
    V = v.reshape(B, S, H, dv_h).transpose(0, 2, 1, 3)
    scores = jnp.einsum("bhqd,bhkd->bhqk", Q, K) / math.sqrt(dim_k)
    attn = jax.nn.softmax(scores, axis=-1).transpose(0, 1, 3, 2)
    out = jnp.einsum("bhqk,bhkd->bhqd", attn, V).reshape(-1, S, D_in)
    return attn, out


if __name__ == "__main__":
    # Small shapes consistent with the module's forward.
    B, S, D_in = 2, 8, 16
    dim_k, dim_v, num_head = 16, 16, 4   # dim_v == D_in so final reshape matches PyTorch

    key = jax.random.PRNGKey(0)
    kx, k1, k2, k3, k4, k5, k6 = jax.random.split(key, 7)
    x = jax.random.normal(kx, (B, S, D_in), dtype=jnp.float32)

    # Deterministic nn.Linear-style params (uniform in +/- 1/sqrt(fan_in)).
    bound = 1.0 / math.sqrt(D_in)
    params = {
        "wq": jax.random.uniform(k1, (dim_k, D_in), jnp.float32, -bound, bound),
        "bq": jax.random.uniform(k2, (dim_k,), jnp.float32, -bound, bound),
        "wk": jax.random.uniform(k3, (dim_k, D_in), jnp.float32, -bound, bound),
        "bk": jax.random.uniform(k4, (dim_k,), jnp.float32, -bound, bound),
        "wv": jax.random.uniform(k5, (dim_v, D_in), jnp.float32, -bound, bound),
        "bv": jax.random.uniform(k6, (dim_v,), jnp.float32, -bound, bound),
    }

    attn, out = multi_head_attention(x, params, dim_k=dim_k, dim_v=dim_v,
                                     num_head=num_head)
    jax.block_until_ready(attn)
    jax.block_until_ready(out)

    attn_ref, out_ref = _reference(x, params, dim_k=dim_k, dim_v=dim_v,
                                   num_head=num_head)
    assert attn.shape == (B, num_head, S, S)
    assert out.shape == (B, S, D_in)
    # Tolerance relaxed vs. 1e-5 because the softmax denominator uses the EUP
    # approximate reciprocal (pl.reciprocal(approx=True)).
    assert jnp.allclose(attn, attn_ref, atol=5e-3, rtol=5e-3)
    assert jnp.allclose(out, out_ref, atol=5e-3, rtol=5e-3)

    print("KERNEL_OK")
</pallas_src>

<mosaic_0001>
module attributes {stable_mosaic.version = 11 : i64} {
  func.func @_mha_kernel(%arg0: i32, %arg1: memref<1x8x16xf32, #tpu.memory_space<vmem>>, %arg2: memref<16x48xf32, #tpu.memory_space<vmem>>, %arg3: memref<1x48xf32, #tpu.memory_space<vmem>>, %arg4: memref<1x4x8x8xf32, #tpu.memory_space<vmem>>, %arg5: memref<1x8x16xf32, #tpu.memory_space<vmem>>) attributes {dimension_semantics = [#tpu.dimension_semantics<parallel>], iteration_bounds = array<i64: 2>, scalar_prefetch = 0 : i64, scratch_operands = 0 : i64, tpu.core_type = #tpu.core_type<tc>, window_params = [{transform_indices = @transform_0, window_bounds = array<i64: 1, 8, 16>}, {pipeline_mode = #tpu.pipeline_mode<synchronous>, transform_indices = @transform_1, window_bounds = array<i64: 16, 48>}, {pipeline_mode = #tpu.pipeline_mode<synchronous>, transform_indices = @transform_2, window_bounds = array<i64: 1, 48>}, {transform_indices = @transform_3, window_bounds = array<i64: 1, 4, 8, 8>}, {transform_indices = @transform_4, window_bounds = array<i64: 1, 8, 16>}]} {
    %c0 = arith.constant 0 : index
    %c0_0 = arith.constant 0 : index
    %c0_1 = arith.constant 0 : index
    %0 = vector.load %arg1[%c0, %c0_0, %c0_1] : memref<1x8x16xf32, #tpu.memory_space<vmem>>, vector<1x8x16xf32>
    %1 = vector.shape_cast %0 : vector<1x8x16xf32> to vector<8x16xf32>
    %c0_2 = arith.constant 0 : index
    %c0_3 = arith.constant 0 : index
    %2 = vector.load %arg2[%c0_2, %c0_3] : memref<16x48xf32, #tpu.memory_space<vmem>>, vector<16x48xf32>
    %cst = arith.constant dense<0.000000e+00> : vector<8x48xf32>
    %3 = tpu.matmul %1, %2, %cst {dimension_numbers = #tpu.dot_dimension_numbers<[1], [0], [0], [1], [0, 0, 1, 1], [], []>} : vector<8x16xf32>, vector<16x48xf32>, vector<8x48xf32> -> vector<8x48xf32>
    %c0_4 = arith.constant 0 : index
    %c0_5 = arith.constant 0 : index
    %4 = vector.load %arg3[%c0_4, %c0_5] : memref<1x48xf32, #tpu.memory_space<vmem>>, vector<1x48xf32>
    %5 = vector.broadcast %4 : vector<1x48xf32> to vector<8x48xf32>
    %6 = arith.addf %3, %5 : vector<8x48xf32>
    %7 = vector.extract_strided_slice %6 {offsets = [0, 0], sizes = [8, 16], strides = [1, 1]} : vector<8x48xf32> to vector<8x16xf32>
    %cst_6 = arith.constant 2.500000e-01 : f32
    %8 = vector.broadcast %cst_6 : f32 to vector<8x16xf32>
    %9 = arith.mulf %7, %8 : vector<8x16xf32>
    %10 = vector.extract_strided_slice %6 {offsets = [0, 16], sizes = [8, 16], strides = [1, 1]} : vector<8x48xf32> to vector<8x16xf32>
    %11 = vector.extract_strided_slice %6 {offsets = [0, 32], sizes = [8, 16], strides = [1, 1]} : vector<8x48xf32> to vector<8x16xf32>
    %12 = vector.extract_strided_slice %9 {offsets = [0, 0], sizes = [8, 4], strides = [1, 1]} : vector<8x16xf32> to vector<8x4xf32>
    %13 = vector.extract_strided_slice %10 {offsets = [0, 0], sizes = [8, 4], strides = [1, 1]} : vector<8x16xf32> to vector<8x4xf32>
    %14 = vector.extract_strided_slice %11 {offsets = [0, 0], sizes = [8, 4], strides = [1, 1]} : vector<8x16xf32> to vector<8x4xf32>
    %cst_7 = arith.constant dense<0.000000e+00> : vector<8x8xf32>
    %15 = tpu.matmul %12, %13, %cst_7 {dimension_numbers = #tpu.dot_dimension_numbers<[1], [1], [0], [0], [0, 0, 1, 0], [], []>} : vector<8x4xf32>, vector<8x4xf32>, vector<8x8xf32> -> vector<8x8xf32>
    %cst_8 = arith.constant dense<0xFF800000> : vector<8xf32>
    %16 = vector.multi_reduction <maximumf>, %15, %cst_8 [1] : vector<8x8xf32> to vector<8xf32>
    %17 = vector.shape_cast %16 : vector<8xf32> to vector<8x1xf32>
    %18 = vector.broadcast %17 : vector<8x1xf32> to vector<8x8xf32>
    %19 = arith.subf %15, %18 : vector<8x8xf32>
    %20 = math.exp %19 : vector<8x8xf32>
    %cst_9 = arith.constant dense<0.000000e+00> : vector<8xf32>
    %21 = vector.multi_reduction <add>, %20, %cst_9 [1] : vector<8x8xf32> to vector<8xf32>
    %22 = vector.shape_cast %21 : vector<8xf32> to vector<8x1xf32>
    %23 = tpu.reciprocal %22 {approx = true} : vector<8x1xf32> -> vector<8x1xf32>
    %24 = vector.broadcast %23 : vector<8x1xf32> to vector<8x8xf32>
    %25 = arith.mulf %20, %24 : vector<8x8xf32>
    %26 = tpu.transpose %25, [1, 0] : vector<8x8xf32> -> vector<8x8xf32>
    %cst_10 = arith.constant dense<0.000000e+00> : vector<8x4xf32>
    %27 = tpu.matmul %25, %14, %cst_10 {dimension_numbers = #tpu.dot_dimension_numbers<[0], [0], [1], [1], [0, 1, 1, 1], [], []>} : vector<8x8xf32>, vector<8x4xf32>, vector<8x4xf32> -> vector<8x4xf32>
    %28 = vector.extract_strided_slice %9 {offsets = [0, 4], sizes = [8, 4], strides = [1, 1]} : vector<8x16xf32> to vector<8x4xf32>
    %29 = vector.extract_strided_slice %10 {offsets = [0, 4], sizes = [8, 4], strides = [1, 1]} : vector<8x16xf32> to vector<8x4xf32>
    %30 = vector.extract_strided_slice %11 {offsets = [0, 4], sizes = [8, 4], strides = [1, 1]} : vector<8x16xf32> to vector<8x4xf32>
    %cst_11 = arith.constant dense<0.000000e+00> : vector<8x8xf32>
    %31 = tpu.matmul %28, %29, %cst_11 {dimension_numbers = #tpu.dot_dimension_numbers<[1], [1], [0], [0], [0, 0, 1, 0], [], []>} : vector<8x4xf32>, vector<8x4xf32>, vector<8x8xf32> -> vector<8x8xf32>
    %cst_12 = arith.constant dense<0xFF800000> : vector<8xf32>
    %32 = vector.multi_reduction <maximumf>, %31, %cst_12 [1] : vector<8x8xf32> to vector<8xf32>
    %33 = vector.shape_cast %32 : vector<8xf32> to vector<8x1xf32>
    %34 = vector.broadcast %33 : vector<8x1xf32> to vector<8x8xf32>
    %35 = arith.subf %31, %34 : vector<8x8xf32>
    %36 = math.exp %35 : vector<8x8xf32>
    %cst_13 = arith.constant dense<0.000000e+00> : vector<8xf32>
    %37 = vector.multi_reduction <add>, %36, %cst_13 [1] : vector<8x8xf32> to vector<8xf32>
    %38 = vector.shape_cast %37 : vector<8xf32> to vector<8x1xf32>
    %39 = tpu.reciprocal %38 {approx = true} : vector<8x1xf32> -> vector<8x1xf32>
    %40 = vector.broadcast %39 : vector<8x1xf32> to vector<8x8xf32>
    %41 = arith.mulf %36, %40 : vector<8x8xf32>
    %42 = tpu.transpose %41, [1, 0] : vector<8x8xf32> -> vector<8x8xf32>
    %cst_14 = arith.constant dense<0.000000e+00> : vector<8x4xf32>
    %43 = tpu.matmul %41, %30, %cst_14 {dimension_numbers = #tpu.dot_dimension_numbers<[0], [0], [1], [1], [0, 1, 1, 1], [], []>} : vector<8x8xf32>, vector<8x4xf32>, vector<8x4xf32> -> vector<8x4xf32>
    %44 = vector.extract_strided_slice %9 {offsets = [0, 8], sizes = [8, 4], strides = [1, 1]} : vector<8x16xf32> to vector<8x4xf32>
    %45 = vector.extract_strided_slice %10 {offsets = [0, 8], sizes = [8, 4], strides = [1, 1]} : vector<8x16xf32> to vector<8x4xf32>
    %46 = vector.extract_strided_slice %11 {offsets = [0, 8], sizes = [8, 4], strides = [1, 1]} : vector<8x16xf32> to vector<8x4xf32>
    %cst_15 = arith.constant dense<0.000000e+00> : vector<8x8xf32>
    %47 = tpu.matmul %44, %45, %cst_15 {dimension_numbers = #tpu.dot_dimension_numbers<[1], [1], [0], [0], [0, 0, 1, 0], [], []>} : vector<8x4xf32>, vector<8x4xf32>, vector<8x8xf32> -> vector<8x8xf32>
    %cst_16 = arith.constant dense<0xFF800000> : vector<8xf32>
    %48 = vector.multi_reduction <maximumf>, %47, %cst_16 [1] : vector<8x8xf32> to vector<8xf32>
    %49 = vector.shape_cast %48 : vector<8xf32> to vector<8x1xf32>
    %50 = vector.broadcast %49 : vector<8x1xf32> to vector<8x8xf32>
    %51 = arith.subf %47, %50 : vector<8x8xf32>
    %52 = math.exp %51 : vector<8x8xf32>
    %cst_17 = arith.constant dense<0.000000e+00> : vector<8xf32>
    %53 = vector.multi_reduction <add>, %52, %cst_17 [1] : vector<8x8xf32> to vector<8xf32>
    %54 = vector.shape_cast %53 : vector<8xf32> to vector<8x1xf32>
    %55 = tpu.reciprocal %54 {approx = true} : vector<8x1xf32> -> vector<8x1xf32>
    %56 = vector.broadcast %55 : vector<8x1xf32> to vector<8x8xf32>
    %57 = arith.mulf %52, %56 : vector<8x8xf32>
    %58 = tpu.transpose %57, [1, 0] : vector<8x8xf32> -> vector<8x8xf32>
    %cst_18 = arith.constant dense<0.000000e+00> : vector<8x4xf32>
    %59 = tpu.matmul %57, %46, %cst_18 {dimension_numbers = #tpu.dot_dimension_numbers<[0], [0], [1], [1], [0, 1, 1, 1], [], []>} : vector<8x8xf32>, vector<8x4xf32>, vector<8x4xf32> -> vector<8x4xf32>
    %60 = vector.extract_strided_slice %9 {offsets = [0, 12], sizes = [8, 4], strides = [1, 1]} : vector<8x16xf32> to vector<8x4xf32>
    %61 = vector.extract_strided_slice %10 {offsets = [0, 12], sizes = [8, 4], strides = [1, 1]} : vector<8x16xf32> to vector<8x4xf32>
    %62 = vector.extract_strided_slice %11 {offsets = [0, 12], sizes = [8, 4], strides = [1, 1]} : vector<8x16xf32> to vector<8x4xf32>
    %cst_19 = arith.constant dense<0.000000e+00> : vector<8x8xf32>
    %63 = tpu.matmul %60, %61, %cst_19 {dimension_numbers = #tpu.dot_dimension_numbers<[1], [1], [0], [0], [0, 0, 1, 0], [], []>} : vector<8x4xf32>, vector<8x4xf32>, vector<8x8xf32> -> vector<8x8xf32>
    %cst_20 = arith.constant dense<0xFF800000> : vector<8xf32>
    %64 = vector.multi_reduction <maximumf>, %63, %cst_20 [1] : vector<8x8xf32> to vector<8xf32>
    %65 = vector.shape_cast %64 : vector<8xf32> to vector<8x1xf32>
    %66 = vector.broadcast %65 : vector<8x1xf32> to vector<8x8xf32>
    %67 = arith.subf %63, %66 : vector<8x8xf32>
    %68 = math.exp %67 : vector<8x8xf32>
    %cst_21 = arith.constant dense<0.000000e+00> : vector<8xf32>
    %69 = vector.multi_reduction <add>, %68, %cst_21 [1] : vector<8x8xf32> to vector<8xf32>
    %70 = vector.shape_cast %69 : vector<8xf32> to vector<8x1xf32>
    %71 = tpu.reciprocal %70 {approx = true} : vector<8x1xf32> -> vector<8x1xf32>
    %72 = vector.broadcast %71 : vector<8x1xf32> to vector<8x8xf32>
    %73 = arith.mulf %68, %72 : vector<8x8xf32>
    %74 = tpu.transpose %73, [1, 0] : vector<8x8xf32> -> vector<8x8xf32>
    %cst_22 = arith.constant dense<0.000000e+00> : vector<8x4xf32>
    %75 = tpu.matmul %73, %62, %cst_22 {dimension_numbers = #tpu.dot_dimension_numbers<[0], [0], [1], [1], [0, 1, 1, 1], [], []>} : vector<8x8xf32>, vector<8x4xf32>, vector<8x4xf32> -> vector<8x4xf32>
    %76 = vector.shape_cast %26 : vector<8x8xf32> to vector<1x8x8xf32>
    %77 = vector.shape_cast %42 : vector<8x8xf32> to vector<1x8x8xf32>
    %78 = vector.shape_cast %58 : vector<8x8xf32> to vector<1x8x8xf32>
    %79 = vector.shape_cast %74 : vector<8x8xf32> to vector<1x8x8xf32>
    %80 = tpu.concatenate %76, %77, %78, %79 in 0 : vector<1x8x8xf32>, vector<1x8x8xf32>, vector<1x8x8xf32>, vector<1x8x8xf32> -> vector<4x8x8xf32>
    %c0_23 = arith.constant 0 : index
    %c0_24 = arith.constant 0 : index
    %c0_25 = arith.constant 0 : index
    %c0_26 = arith.constant 0 : index
    %81 = vector.load %arg4[%c0_23, %c0_24, %c0_25, %c0_26] : memref<1x4x8x8xf32, #tpu.memory_space<vmem>>, vector<1x4x8x8xf32>
    %82 = vector.shape_cast %81 : vector<1x4x8x8xf32> to vector<4x8x8xf32>
    %83 = vector.shape_cast %80 : vector<4x8x8xf32> to vector<1x4x8x8xf32>
    tpu.vector_store %arg4[%c0_23, %c0_24, %c0_25, %c0_26], %83 {strides = array<i32>} : memref<1x4x8x8xf32, #tpu.memory_space<vmem>>, vector<1x4x8x8xf32>,
    %84 = tpu.concatenate %27, %43, %59, %75 in 1 : vector<8x4xf32>, vector<8x4xf32>, vector<8x4xf32>, vector<8x4xf32> -> vector<8x16xf32>
    %c0_27 = arith.constant 0 : index
    %c0_28 = arith.constant 0 : index
    %c0_29 = arith.constant 0 : index
    %85 = vector.load %arg5[%c0_27, %c0_28, %c0_29] : memref<1x8x16xf32, #tpu.memory_space<vmem>>, vector<1x8x16xf32>
    %86 = vector.shape_cast %85 : vector<1x8x16xf32> to vector<8x16xf32>
    %87 = vector.shape_cast %84 : vector<8x16xf32> to vector<1x8x16xf32>
    tpu.vector_store %arg5[%c0_27, %c0_28, %c0_29], %87 {strides = array<i32>} : memref<1x8x16xf32, #tpu.memory_space<vmem>>, vector<1x8x16xf32>,
    return
  }
  func.func @transform_0(%arg0: i32) -> (i32, i32, i32) {
    %c0_i32 = arith.constant 0 : i32
    %c0_i32_0 = arith.constant 0 : i32
    %c0_i32_1 = arith.constant 0 : i32
    return %arg0, %c0_i32, %c0_i32_0 : i32, i32, i32
  }
  func.func @transform_1(%arg0: i32) -> (i32, i32) {
    %c0_i32 = arith.constant 0 : i32
    %c0_i32_0 = arith.constant 0 : i32
    %c0_i32_1 = arith.constant 0 : i32
    return %c0_i32, %c0_i32_0 : i32, i32
  }
  func.func @transform_2(%arg0: i32) -> (i32, i32) {
    %c0_i32 = arith.constant 0 : i32
    %c0_i32_0 = arith.constant 0 : i32
    %c0_i32_1 = arith.constant 0 : i32
    return %c0_i32, %c0_i32_0 : i32, i32
  }
  func.func @transform_3(%arg0: i32) -> (i32, i32, i32, i32) {
    %c0_i32 = arith.constant 0 : i32
    %c0_i32_0 = arith.constant 0 : i32
    %c0_i32_1 = arith.constant 0 : i32
    %c0_i32_2 = arith.constant 0 : i32
    return %arg0, %c0_i32, %c0_i32_0, %c0_i32_1 : i32, i32, i32, i32
  }
  func.func @transform_4(%arg0: i32) -> (i32, i32, i32) {
    %c0_i32 = arith.constant 0 : i32
    %c0_i32_0 = arith.constant 0 : i32
    %c0_i32_1 = arith.constant 0 : i32
    return %arg0, %c0_i32, %c0_i32_0 : i32, i32, i32
  }
}

</mosaic_0001>

<llo_original>
// kernel: tpu_custom_call.1
$region0: #{tpu_custom_call.1}
  #allocation0 [shape = 'u32[]', space=smem, size = 0x4, offset = 0x4, fixed_abs, tag = 'smem constant byte address 0x4 - core index']
  #allocation1 [shape = 'u32[144,128]{1,0:T(1,128)}', space=vmem, size = 0x12000, scoped, tag = 'internal scratch']
  %s0 = inlined_call_operand.hbm [shape: f32[2,8,16], index: 0, kind: input, shape index: {}]
  %s1 = inlined_call_operand.hbm [shape: f32[16,48], index: 1, kind: input, shape index: {}]
  %s2 = inlined_call_operand.vmem [shape: f32[1,48], index: 2, kind: input, shape index: {}]
  %s3 = inlined_call_operand.hbm [shape: f32[2,4,8,8], index: 3, kind: output, shape index: {0}]
  %s4 = inlined_call_operand.hbm [shape: f32[2,8,16], index: 4, kind: output, shape index: {1}]
  %5 = xla_tuple %s3, %s4
  %s6 = sld [smem:[#allocation0]]
  $region61: #{tpu_custom_call.1} parent=0
    _
  %s8 = ssub.s32 1, %s6
  %s9 = scalar_select 0, %s8, %s6
  $region1: #{tpu_custom_call.1} parent=0
    #allocation2 [shape = 'u8[8192]{0}', space=vmem, size = 0x2000, scoped, tag = 'input window, operand 0']
    #allocation3 [shape = 's32[2]{0}', space=sflag, size = 0x8, scoped, tag = 'scoped memory for tpu_custom_call.1']
    #allocation4 [shape = 's32[2]{0}', space=sflag, size = 0x8, scoped, tag = 'scoped memory for tpu_custom_call.1']
    #allocation5 [shape = 'u8[8192]{0}', space=vmem, size = 0x2000, scoped, tag = 'input window, operand 1, single buffered']
    #allocation6 [shape = 's32[1]{0}', space=sflag, size = 0x4, scoped, tag = 'scoped memory for tpu_custom_call.1']
    #allocation7 [shape = 'u8[32768]{0}', space=vmem, size = 0x8000, scoped, tag = 'output window, operand 0']
    #allocation8 [shape = 'u8[8192]{0}', space=vmem, size = 0x2000, scoped, tag = 'output window, operand 1']
    #allocation9 [shape = 's32[2]{0}', space=sflag, size = 0x8, scoped, tag = 'scoped memory for tpu_custom_call.1']
    %10 = vsyncpa [#allocation3], 0
    %s11 = scalar_lea.sflag [#allocation3], 1
    %12 = vsyncpa %s11, 0
    %13 = vsyncpa [#allocation6], 0
    %14 = vsyncpa [#allocation4], 0
    %s15 = scalar_lea.sflag [#allocation4], 1
    %16 = vsyncpa %s15, 0
    %17 = vsyncpa [#allocation9], 0
    %s18 = scalar_lea.sflag [#allocation9], 1
    %19 = vsyncpa %s18, 0
    loop: start=0, step=1, limit=4
    $region2: #{tpu_custom_call.1} parent=1 // loop_pre_header
      _
    $region3: #{tpu_custom_call.1} parent=1 // loop_header
      %s21 = sphi 0, %s25
      %p22 = scmp.ge.s32.totalorder %s21, 4
      %s31 = sphi 0, %s33
      %s34 = sphi 0, %s31
      %s35 = sphi 0, %s34
      %s51 = sphi 0, %s35
      %s55 = sphi 0, %s55
      %s57 = sphi 0, %s55
      %s58 = sphi 0, %s57
      %s72 = sphi 0, %s58
      %s76 = sphi 0, %s76
      %s78 = sphi 0, %s76
      %s79 = sphi 0, %s78
      %s93 = sphi 0, %s79
      %s99 = sphi 0, %s101
      %s102 = sphi 0, %s99
      %s103 = sphi 0, %s102
      %s119 = sphi 0, %s103
      %s125 = sphi 0, %s127
      %s128 = sphi 0, %s125
      %s129 = sphi 0, %s128
      %s145 = sphi 0, %s129
    $region4: #{tpu_custom_call.1} parent=1 // loop_header_branch
      %24 = sbr.rel (%p22) target = $region8
    $region5: #{tpu_custom_call.1} parent=1 // loop_body
      %s26 = ssub.s32 %s21, 1
      %s27 = ssub.s32 %s21, 2
      %s28 = sadd.s32 %s21, 1
      %s29 = ssub.s32 %s21, %s28
      %p30 = scmp.eq.s32.totalorder %s29, 0
      %s32 = sadd.s32 %s31, 1
      %s33 = scalar_select %p30, %s31, %s32
      %p36 = pneg %p30
      %p37 = scmp.eq.s32.totalorder %s21, 1
      %p38 = por %p36, %p37
      %p39 = scmp.ne.s32.totalorder %s31, %s34
      %p40 = scmp.eq.s32.totalorder %s21, 0
      %p41 = por %p39, %p40
      %p42 = scmp.ne.s32.totalorder %s31, %s34
      %p43 = scmp.eq.s32.totalorder %s26, 1
      %p44 = por %p42, %p43
      %p45 = scmp.ne.s32.totalorder %s34, %s35
      %p46 = scmp.eq.s32.totalorder %s26, 0
      %p47 = por %p45, %p46
      %p48 = scmp.ne.s32.totalorder %s34, %s35
      %p49 = scmp.eq.s32.totalorder %s27, 1
      %p50 = por %p48, %p49
      %p52 = scmp.ne.s32.totalorder %s35, %s51
      %p53 = scmp.eq.s32.totalorder %s27, 0
      %p54 = por %p52, %p53
      %s56 = sadd.s32 %s55, 1
      %p59 = scmp.eq.s32.totalorder %s21, 1
      %p60 = scmp.ne.s32.totalorder %s55, %s57
      %p61 = scmp.eq.s32.totalorder %s21, 0
      %p62 = por %p60, %p61
      %p63 = scmp.ne.s32.totalorder %s55, %s57
      %p64 = scmp.eq.s32.totalorder %s26, 1
      %p65 = por %p63, %p64
      %p66 = scmp.ne.s32.totalorder %s57, %s58
      %p67 = scmp.eq.s32.totalorder %s26, 0
      %p68 = por %p66, %p67
      %p69 = scmp.ne.s32.totalorder %s57, %s58
      %p70 = scmp.eq.s32.totalorder %s27, 1
      %p71 = por %p69, %p70
      %p73 = scmp.ne.s32.totalorder %s58, %s72
      %p74 = scmp.eq.s32.totalorder %s27, 0
      %p75 = por %p73, %p74
      %s77 = sadd.s32 %s76, 1
      %p80 = scmp.eq.s32.totalorder %s21, 1
      %p81 = scmp.ne.s32.totalorder %s76, %s78
      %p82 = scmp.eq.s32.totalorder %s21, 0
      %p83 = por %p81, %p82
      %p84 = scmp.ne.s32.totalorder %s76, %s78
      %p85 = scmp.eq.s32.totalorder %s26, 1
      %p86 = por %p84, %p85
      %p87 = scmp.ne.s32.totalorder %s78, %s79
      %p88 = scmp.eq.s32.totalorder %s26, 0
      %p89 = por %p87, %p88
      %p90 = scmp.ne.s32.totalorder %s78, %s79
      %p91 = scmp.eq.s32.totalorder %s27, 1
      %p92 = por %p90, %p91
      %p94 = scmp.ne.s32.totalorder %s79, %s93
      %p95 = scmp.eq.s32.totalorder %s27, 0
      %p96 = por %p94, %p95
      %s97 = ssub.s32 %s21, %s28
      %p98 = scmp.eq.s32.totalorder %s97, 0
      %s100 = sadd.s32 %s99, 1
      %s101 = scalar_select %p98, %s99, %s100
      %p104 = pneg %p98
      %p105 = scmp.eq.s32.totalorder %s21, 1
      %p106 = por %p104, %p105
      %p107 = scmp.ne.s32.totalorder %s99, %s102
      %p108 = scmp.eq.s32.totalorder %s21, 0
      %p109 = por %p107, %p108
      %p110 = scmp.ne.s32.totalorder %s99, %s102
      %p111 = scmp.eq.s32.totalorder %s26, 1
      %p112 = por %p110, %p111
      %p113 = scmp.ne.s32.totalorder %s102, %s103
      %p114 = scmp.eq.s32.totalorder %s26, 0
      %p115 = por %p113, %p114
      %p116 = scmp.ne.s32.totalorder %s102, %s103
      %p117 = scmp.eq.s32.totalorder %s27, 1
      %p118 = por %p116, %p117
      %p120 = scmp.ne.s32.totalorder %s103, %s119
      %p121 = scmp.eq.s32.totalorder %s27, 0
      %p122 = por %p120, %p121
      %s123 = ssub.s32 %s21, %s28
      %p124 = scmp.eq.s32.totalorder %s123, 0
      %s126 = sadd.s32 %s125, 1
      %s127 = scalar_select %p124, %s125, %s126
      %p130 = pneg %p124
      %p131 = scmp.eq.s32.totalorder %s21, 1
      %p132 = por %p130, %p131
      %p133 = scmp.ne.s32.totalorder %s125, %s128
      %p134 = scmp.eq.s32.totalorder %s21, 0
      %p135 = por %p133, %p134
      %p136 = scmp.ne.s32.totalorder %s125, %s128
      %p137 = scmp.eq.s32.totalorder %s26, 1
      %p138 = por %p136, %p137
      %p139 = scmp.ne.s32.totalorder %s128, %s129
      %p140 = scmp.eq.s32.totalorder %s26, 0
      %p141 = por %p139, %p140
      %p142 = scmp.ne.s32.totalorder %s128, %s129
      %p143 = scmp.eq.s32.totalorder %s27, 1
      %p144 = por %p142, %p143
      %p146 = scmp.ne.s32.totalorder %s129, %s145
      %p147 = scmp.eq.s32.totalorder %s27, 0
      %p148 = por %p146, %p147
      %p149 = scmp.le.s32.totalorder 1, %s21
      %p150 = scmp.lt.s32.totalorder %s21, 3
      %p151 = pnand %p149, %p150
      %p152 = pneg %p151
      // Predicated region
      $region9: #{tpu_custom_call.1} parent=5 // pred_check
        _
      $region10: #{tpu_custom_call.1} parent=5 // pred_check_branch
        %154 = sbr.rel (%p151) target = $region12
      $region11: #{tpu_custom_call.1} parent=5 // pred_region
        %s155 = ssub.s32 %s21, 1
        // Predicated region
        $region13: #{tpu_custom_call.1} parent=11 // pred_check
          %p156 = pneg %p68
        $region14: #{tpu_custom_call.1} parent=11 // pred_check_branch
          %158 = sbr.rel (%p156) target = $region16
        $region15: #{tpu_custom_call.1} parent=11 // pred_region
          %s160 = ssub.s32 256, 256
          %161 = vsyncadd [#allocation6], %s160
          %s162 = sshll.u32 [#allocation5], 4
          %s163 = int_to_ptr.vmem [resolvable:$true] %s162
          %168 = dma.hbm_to_vmem [thread:$0]  %s1, 256, %s163, [#allocation6], 128, 128, 8
        $region16: #{tpu_custom_call.1} parent=11 // pred_fallthru
          _
        // Predicated region
        $region17: #{tpu_custom_call.1} parent=11 // pred_check
          %p169 = pneg %p89
        $region18: #{tpu_custom_call.1} parent=11 // pred_check_branch
          %171 = sbr.rel (%p169) target = $region20
        $region19: #{tpu_custom_call.1} parent=11 // pred_region
          _
        $region20: #{tpu_custom_call.1} parent=11 // pred_fallthru
          _
      $region12: #{tpu_custom_call.1} parent=5 // pred_fallthru
        _
      %p172 = scmp.lt.s32.totalorder %s21, 2
      // Predicated region
      $region21: #{tpu_custom_call.1} parent=5 // pred_check
        %p173 = pneg %p172
      $region22: #{tpu_custom_call.1} parent=5 // pred_check_branch
        %175 = sbr.rel (%p173) target = $region24
      $region23: #{tpu_custom_call.1} parent=5 // pred_region
        // Predicated region
        $region25: #{tpu_custom_call.1} parent=23 // pred_check
          %p176 = pneg %p41
        $region26: #{tpu_custom_call.1} parent=23 // pred_check_branch
          %178 = sbr.rel (%p176) target = $region28
        $region27: #{tpu_custom_call.1} parent=23 // pred_region
          %s179 = sand.u32 %s31, 1
          %s180 = scalar_lea.sflag [#allocation3], %s179
          %s181 = sand.u32 %s31, 1
          %s182 = smul.addr %s181, 8
          %s183 = scalar_lea.vmem [#allocation2], %s182
          %s185 = ssub.s32 128, 128
          %186 = vsyncadd %s180, %s185
          %s187 = smul.addr %s21, 128
          %s188 = scalar_lea.hbm %s0, %s187
          %s190 = sshll.u32 %s183, 4
          %s191 = int_to_ptr.vmem [resolvable:$true] %s190
          %193 = dma.hbm_to_vmem [thread:$0]  %s188, 128, %s191, %s180
        $region28: #{tpu_custom_call.1} parent=23 // pred_fallthru
          _
      $region24: #{tpu_custom_call.1} parent=5 // pred_fallthru
        _
      %p194 = scmp.le.s32.totalorder 1, %s21
      %p195 = scmp.lt.s32.totalorder %s21, 3
      %p196 = pnand %p194, %p195
      %p197 = pneg %p196
      // Predicated region
      $region29: #{tpu_custom_call.1} parent=5 // pred_check
        _
      $region30: #{tpu_custom_call.1} parent=5 // pred_check_branch
        %199 = sbr.rel (%p196) target = $region32
      $region31: #{tpu_custom_call.1} parent=5 // pred_region
        %s200 = ssub.s32 %s21, 1
        %s201 = sand.u32 %s34, 1
        %s202 = scalar_lea.sflag [#allocation3], %s201
        %s203 = sand.u32 %s34, 1
        %s204 = smul.addr %s203, 8
        %s205 = scalar_lea.vmem [#allocation2], %s204
        // Predicated region
        $region33: #{tpu_custom_call.1} parent=31 // pred_check
          %p206 = pneg %p47
        $region34: #{tpu_custom_call.1} parent=31 // pred_check_branch
          %208 = sbr.rel (%p206) target = $region36
        $region35: #{tpu_custom_call.1} parent=31 // pred_region
          %209 = dma.done %s202, 128
        $region36: #{tpu_custom_call.1} parent=31 // pred_fallthru
          _
        // Predicated region
        $region37: #{tpu_custom_call.1} parent=31 // pred_check
          %p210 = pneg %p68
        $region38: #{tpu_custom_call.1} parent=31 // pred_check_branch
          %212 = sbr.rel (%p210) target = $region40
        $region39: #{tpu_custom_call.1} parent=31 // pred_region
          %213 = dma.done [#allocation6], 256
        $region40: #{tpu_custom_call.1} parent=31 // pred_fallthru
          _
        %s214 = sand.u32 %s34, 1
        %s215 = scalar_lea.sflag [#allocation3], %s214
        %s216 = sand.u32 %s34, 1
        %s217 = smul.addr %s216, 8
        %s218 = scalar_lea.vmem [#allocation2], %s217
        %p219 = pneg %p47
        %p220 = pneg %p44
        %p221 = pneg %p68
        %p222 = pneg %p65
        %p223 = pneg %p89
        %p224 = pneg %p86
        %p225 = pneg %p115
        %p226 = pneg %p112
        %s227 = sand.u32 %s102, 1
        %s228 = scalar_lea.sflag [#allocation4], %s227
        %s229 = sand.u32 %s102, 1
        %s230 = smul.addr %s229, 32
        %s231 = scalar_lea.vmem [#allocation7], %s230
        %p232 = pneg %p141
        %p233 = pneg %p138
        %s234 = sand.u32 %s128, 1
        %s235 = scalar_lea.sflag [#allocation9], %s234
        %s236 = sand.u32 %s128, 1
        %s237 = smul.addr %s236, 8
        %s238 = scalar_lea.vmem [#allocation8], %s237
        %v239 = vld [vmem:[%s205] sm:$0xff]
        %v240 = vld [vmem:[#allocation5] sm:$0xff]
        %v241 = vld [vmem:[#allocation5 + $0x8] sm:$0xff]
        %v242 = vld [vmem:[%s2] sm:$0x1]
        %v244 = vlaneseq
        %v245 = vshrl.u32 %v244, 7
        %v246 = vsub.s32 0, %v245
        %v247 = vrot.slane %v242, %v246
        %vm249 = vcmask 130048
        %v251 = vsel %vm249, %v239, 0
        %253 = vmatprep.subr.mxu0 0.0
        %254 = vmatpush1.msra.mxu0 %v240
        %255 = vmatprep.subr.mxu0 0.0
        %256 = vmatpush1.msra.mxu0 %v241
        %257 = vmatprep.subr.mxu0 0.0
        %258 = vmatpush1.msra.mxu0 0.0
        %259 = vmatprep.subr.mxu0 0.0
        %260 = vmatpush1.msra.mxu0 0.0
        %261 = vmatprep.subr.mxu0 0.0
        %262 = vmatpush1.msra.mxu0 0.0
        %263 = vmatprep.subr.mxu0 0.0
        %264 = vmatpush1.msra.mxu0 0.0
        %265 = vmatprep.subr.mxu0 0.0
        %266 = vmatpush1.msra.mxu0 0.0
        %267 = vmatprep.subr.mxu0 0.0
        %268 = vmatpush1.msra.mxu0 0.0
        %269 = vmatprep.subr.mxu0 0.0
        %270 = vmatpush1.msra.mxu0 0.0
        %271 = vmatprep.subr.mxu0 0.0
        %272 = vmatpush1.msra.mxu0 0.0
        %273 = vmatprep.subr.mxu0 0.0
        %274 = vmatpush1.msra.mxu0 0.0
        %275 = vmatprep.subr.mxu0 0.0
        %276 = vmatpush1.msra.mxu0 0.0
        %277 = vmatprep.subr.mxu0 0.0
        %278 = vmatpush1.msra.mxu0 0.0
        %279 = vmatprep.subr.mxu0 0.0
        %280 = vmatpush1.msra.mxu0 0.0
        %281 = vmatprep.subr.mxu0 0.0
        %282 = vmatpush1.msra.mxu0 0.0
        %283 = vmatprep.subr.mxu0 0.0
        %284 = vmatpush1.msra.mxu0 0.0
        %285 = vmatprep.subr.mxu0 0.0
        %286 = vmatpush1.msra.mxu0 0.0
        %287 = vmatprep.subr.mxu0 0.0
        %288 = vmatpush1.msra.mxu0 0.0
        %289 = vmatprep.subr.mxu0 0.0
        %290 = vmatpush1.msra.mxu0 0.0
        %291 = vmatprep.subr.mxu0 0.0
        %292 = vmatpush1.msra.mxu0 0.0
        %293 = vmatprep.subr.mxu0 0.0
        %294 = vmatpush1.msra.mxu0 0.0
        %295 = vmatprep.subr.mxu0 0.0
        %296 = vmatpush1.msra.mxu0 0.0
        %297 = vmatprep.subr.mxu0 0.0
        %298 = vmatpush1.msra.mxu0 0.0
        %299 = vmatprep.subr.mxu0 0.0
        %300 = vmatpush1.msra.mxu0 0.0
        %301 = vmatprep.subr.mxu0 0.0
        %302 = vmatpush1.msra.mxu0 0.0
        %303 = vmatprep.subr.mxu0 0.0
        %304 = vmatpush1.msra.mxu0 0.0
        %305 = vmatprep.subr.mxu0 0.0
        %306 = vmatpush1.msra.mxu0 0.0
        %307 = vmatprep.subr.mxu0 0.0
        %308 = vmatpush1.msra.mxu0 0.0
        %309 = vmatprep.subr.mxu0 0.0
        %310 = vmatpush1.msra.mxu0 0.0
        %311 = vmatprep.subr.mxu0 0.0
        %312 = vmatpush1.msra.mxu0 0.0
        %313 = vmatprep.subr.mxu0 0.0
        %314 = vmatpush1.msra.mxu0 0.0
        %315 = vmatprep.subr.mxu0 0.0
        %316 = vmatpush1.msra.mxu0 0.0
        %317 = vmatprep.mubr.f32.mxu0 0.0
        %318 = vmatmul.mubr.f32.gmra.mrb[0].mxu0 %v251
        %v319 = vpop.f32.mrb[0].mxu0
        %v320 = vadd.f32 %v247, %v319
        %v321 = vpop.f32.mrb[0].mxu0
        %322 = vdwg.mxu0
        %v323 = vmul.f32 %v320, 0.25
        %325 = vrot.lane.b32.xlu0 %v320, 112
        %v326 = vpop.permute.xlu0 %325
        %vm327 = vcmask 31744
        %v329 = vsel %vm327, %v323, 0
        %v331 = vsel %vm327, %v326, 0
        %333 = vmatprep.subr.mxu0 0.0
        %334 = vmatpush1.xpose.msra.mxu0 %v331
        %335 = vmatprep.subr.mxu0 0.0
        %336 = vmatpush1.xpose.msra.mxu0 0.0
        %337 = vmatprep.subr.mxu0 0.0
        %338 = vmatpush1.xpose.msra.mxu0 0.0
        %339 = vmatprep.subr.mxu0 0.0
        %340 = vmatpush1.xpose.msra.mxu0 0.0
        %341 = vmatprep.subr.mxu0 0.0
        %342 = vmatpush1.xpose.msra.mxu0 0.0
        %343 = vmatprep.subr.mxu0 0.0
        %344 = vmatpush1.xpose.msra.mxu0 0.0
        %345 = vmatprep.subr.mxu0 0.0
        %346 = vmatpush1.xpose.msra.mxu0 0.0
        %347 = vmatprep.subr.mxu0 0.0
        %348 = vmatpush1.xpose.msra.mxu0 0.0
        %349 = vmatprep.subr.mxu0 0.0
        %350 = vmatpush1.xpose.msra.mxu0 0.0
        %351 = vmatprep.subr.mxu0 0.0
        %352 = vmatpush1.xpose.msra.mxu0 0.0
        %353 = vmatprep.subr.mxu0 0.0
        %354 = vmatpush1.xpose.msra.mxu0 0.0
        %355 = vmatprep.subr.mxu0 0.0
        %356 = vmatpush1.xpose.msra.mxu0 0.0
        %357 = vmatprep.subr.mxu0 0.0
        %358 = vmatpush1.xpose.msra.mxu0 0.0
        %359 = vmatprep.subr.mxu0 0.0
        %360 = vmatpush1.xpose.msra.mxu0 0.0
        %361 = vmatprep.subr.mxu0 0.0
        %362 = vmatpush1.xpose.msra.mxu0 0.0
        %363 = vmatprep.subr.mxu0 0.0
        %364 = vmatpush1.xpose.msra.mxu0 0.0
        %365 = vmatprep.subr.mxu0 0.0
        %366 = vmatpush1.xpose.msra.mxu0 0.0
        %367 = vmatprep.subr.mxu0 0.0
        %368 = vmatpush1.xpose.msra.mxu0 0.0
        %369 = vmatprep.subr.mxu0 0.0
        %370 = vmatpush1.xpose.msra.mxu0 0.0
        %371 = vmatprep.subr.mxu0 0.0
        %372 = vmatpush1.xpose.msra.mxu0 0.0
        %373 = vmatprep.subr.mxu0 0.0
        %374 = vmatpush1.xpose.msra.mxu0 0.0
        %375 = vmatprep.subr.mxu0 0.0
        %376 = vmatpush1.xpose.msra.mxu0 0.0
        %377 = vmatprep.subr.mxu0 0.0
        %378 = vmatpush1.xpose.msra.mxu0 0.0
        %379 = vmatprep.subr.mxu0 0.0
        %380 = vmatpush1.xpose.msra.mxu0 0.0
        %381 = vmatprep.subr.mxu0 0.0
        %382 = vmatpush1.xpose.msra.mxu0 0.0
        %383 = vmatprep.subr.mxu0 0.0
        %384 = vmatpush1.xpose.msra.mxu0 0.0
        %385 = vmatprep.subr.mxu0 0.0
        %386 = vmatpush1.xpose.msra.mxu0 0.0
        %387 = vmatprep.subr.mxu0 0.0
        %388 = vmatpush1.xpose.msra.mxu0 0.0
        %389 = vmatprep.subr.mxu0 0.0
        %390 = vmatpush1.xpose.msra.mxu0 0.0
        %391 = vmatprep.subr.mxu0 0.0
        %392 = vmatpush1.xpose.msra.mxu0 0.0
        %393 = vmatprep.subr.mxu0 0.0
        %394 = vmatpush1.xpose.msra.mxu0 0.0
        %395 = vmatprep.subr.mxu0 0.0
        %396 = vmatpush1.xpose.msra.mxu0 0.0
        %397 = vmatprep.mubr.f32.mxu0 0.0
        %398 = vmatmul.mubr.f32.gmra.mrb[0].mxu0 %v329
        %v399 = vpop.f32.mrb[0].mxu0
        %v400 = vadd.f32 0.0, %v399
        %v401 = vpop.f32.mrb[0].mxu0
        %402 = vdwg.mxu0
        %vm403 = vcmask 64512
        %v404 = vsel %vm403, %v400, -inf
        %405 = vmax.xlane.f32.xlu0 %v404
        %v406 = vpop.xlane.xlu0 %405
        %v407 = vsub.f32 %v400, %v406
        %v408 = vmul.f32 %v407, 1.442695
        %v409 = vpow.pop %v408
        %v410 = vsel %vm403, %v409, 0.0
        %411 = vadd.xlane.f32.xlu0 %v410
        %v412 = vpop.xlane.xlu0 %411
        %v413 = vrcp.pop %v412
        %v414 = vmul.f32 %v409, %v413
        %415 = vxpose.xlu0.b32.start [1/16] %v414, 128
        %416 = vxpose.xlu0.b32.cont [2/16] 0.0, 128
        %417 = vxpose.xlu0.b32.cont [3/16] 0.0, 128
        %418 = vxpose.xlu0.b32.cont [4/16] 0.0, 128
        %419 = vxpose.xlu0.b32.cont [5/16] 0.0, 128
        %420 = vxpose.xlu0.b32.cont [6/16] 0.0, 128
        %421 = vxpose.xlu0.b32.cont [7/16] 0.0, 128
        %422 = vxpose.xlu0.b32.cont [8/16] 0.0, 128
        %423 = vxpose.xlu0.b32.cont [9/16] 0.0, 128
        %424 = vxpose.xlu0.b32.cont [10/16] 0.0, 128
        %425 = vxpose.xlu0.b32.cont [11/16] 0.0, 128
        %426 = vxpose.xlu0.b32.cont [12/16] 0.0, 128
        %427 = vxpose.xlu0.b32.cont [13/16] 0.0, 128
        %428 = vxpose.xlu0.b32.cont [14/16] 0.0, 128
        %429 = vxpose.xlu0.b32.cont [15/16] 0.0, 128
        %430 = vxpose.xlu0.b32.end [16/16] 0.0, 128
        %v431 = vpop.trf.xlu0
        %v432 = vpop.trf.xlu0
        %v433 = vpop.trf.xlu0
        %v434 = vpop.trf.xlu0
        %v435 = vpop.trf.xlu0
        %v436 = vpop.trf.xlu0
        %v437 = vpop.trf.xlu0
        %v438 = vpop.trf.xlu0
        %v439 = vpop.trf.xlu0
        %v440 = vpop.trf.xlu0
        %v441 = vpop.trf.xlu0
        %v442 = vpop.trf.xlu0
        %v443 = vpop.trf.xlu0
        %v444 = vpop.trf.xlu0
        %v445 = vpop.trf.xlu0
        %v446 = vpop.trf.xlu0
        %447 = vrot.lane.b32.xlu0 %v320, 96
        %v448 = vpop.permute.xlu0 %447
        %v451 = vsel %vm403, %v431, 0
        %453 = vmatprep.subr.mxu0 0.0
        %454 = vmatpush1.msra.mxu0 %v448
        %455 = vmatprep.subr.mxu0 0.0
        %456 = vmatpush1.msra.mxu0 0.0
        %457 = vmatprep.subr.mxu0 0.0
        %458 = vmatpush1.msra.mxu0 0.0
        %459 = vmatprep.subr.mxu0 0.0
        %460 = vmatpush1.msra.mxu0 0.0
        %461 = vmatprep.subr.mxu0 0.0
        %462 = vmatpush1.msra.mxu0 0.0
        %463 = vmatprep.subr.mxu0 0.0
        %464 = vmatpush1.msra.mxu0 0.0
        %465 = vmatprep.subr.mxu0 0.0
        %466 = vmatpush1.msra.mxu0 0.0
        %467 = vmatprep.subr.mxu0 0.0
        %468 = vmatpush1.msra.mxu0 0.0
        %469 = vmatprep.subr.mxu0 0.0
        %470 = vmatpush1.msra.mxu0 0.0
        %471 = vmatprep.subr.mxu0 0.0
        %472 = vmatpush1.msra.mxu0 0.0
        %473 = vmatprep.subr.mxu0 0.0
        %474 = vmatpush1.msra.mxu0 0.0
        %475 = vmatprep.subr.mxu0 0.0
        %476 = vmatpush1.msra.mxu0 0.0
        %477 = vmatprep.subr.mxu0 0.0
        %478 = vmatpush1.msra.mxu0 0.0
        %479 = vmatprep.subr.mxu0 0.0
        %480 = vmatpush1.msra.mxu0 0.0
        %481 = vmatprep.subr.mxu0 0.0
        %482 = vmatpush1.msra.mxu0 0.0
        %483 = vmatprep.subr.mxu0 0.0
        %484 = vmatpush1.msra.mxu0 0.0
        %485 = vmatprep.subr.mxu0 0.0
        %486 = vmatpush1.msra.mxu0 0.0
        %487 = vmatprep.subr.mxu0 0.0
        %488 = vmatpush1.msra.mxu0 0.0
        %489 = vmatprep.subr.mxu0 0.0
        %490 = vmatpush1.msra.mxu0 0.0
        %491 = vmatprep.subr.mxu0 0.0
        %492 = vmatpush1.msra.mxu0 0.0
        %493 = vmatprep.subr.mxu0 0.0
        %494 = vmatpush1.msra.mxu0 0.0
        %495 = vmatprep.subr.mxu0 0.0
        %496 = vmatpush1.msra.mxu0 0.0
        %497 = vmatprep.subr.mxu0 0.0
        %498 = vmatpush1.msra.mxu0 0.0
        %499 = vmatprep.subr.mxu0 0.0
        %500 = vmatpush1.msra.mxu0 0.0
        %501 = vmatprep.subr.mxu0 0.0
        %502 = vmatpush1.msra.mxu0 0.0
        %503 = vmatprep.subr.mxu0 0.0
        %504 = vmatpush1.msra.mxu0 0.0
        %505 = vmatprep.subr.mxu0 0.0
        %506 = vmatpush1.msra.mxu0 0.0
        %507 = vmatprep.subr.mxu0 0.0
        %508 = vmatpush1.msra.mxu0 0.0
        %509 = vmatprep.subr.mxu0 0.0
        %510 = vmatpush1.msra.mxu0 0.0
        %511 = vmatprep.subr.mxu0 0.0
        %512 = vmatpush1.msra.mxu0 0.0
        %513 = vmatprep.subr.mxu0 0.0
        %514 = vmatpush1.msra.mxu0 0.0
        %515 = vmatprep.subr.mxu0 0.0
        %516 = vmatpush1.msra.mxu0 0.0
        %517 = vmatprep.mubr.f32.mxu0 0.0
        %518 = vmatmul.mubr.f32.gmra.mrb[0].mxu0 %v451
        %v519 = vpop.f32.mrb[0].mxu0
        %v520 = vadd.f32 0.0, %v519
        %v521 = vpop.f32.mrb[0].mxu0
        %522 = vdwg.mxu0
        %523 = vrot.lane.b32.xlu0 %v323, 124
        %v524 = vpop.permute.xlu0 %523
        %525 = vrot.lane.b32.xlu0 %v320, 108
        %v526 = vpop.permute.xlu0 %525
        %v527 = vsel %vm327, %v524, 0
        %v529 = vsel %vm327, %v526, 0
        %531 = vmatprep.subr.mxu0 0.0
        %532 = vmatpush1.xpose.msra.mxu0 %v529
        %533 = vmatprep.subr.mxu0 0.0
        %534 = vmatpush1.xpose.msra.mxu0 0.0
        %535 = vmatprep.subr.mxu0 0.0
        %536 = vmatpush1.xpose.msra.mxu0 0.0
        %537 = vmatprep.subr.mxu0 0.0
        %538 = vmatpush1.xpose.msra.mxu0 0.0
        %539 = vmatprep.subr.mxu0 0.0
        %540 = vmatpush1.xpose.msra.mxu0 0.0
        %541 = vmatprep.subr.mxu0 0.0
        %542 = vmatpush1.xpose.msra.mxu0 0.0
        %543 = vmatprep.subr.mxu0 0.0
        %544 = vmatpush1.xpose.msra.mxu0 0.0
        %545 = vmatprep.subr.mxu0 0.0
        %546 = vmatpush1.xpose.msra.mxu0 0.0
        %547 = vmatprep.subr.mxu0 0.0
        %548 = vmatpush1.xpose.msra.mxu0 0.0
        %549 = vmatprep.subr.mxu0 0.0
        %550 = vmatpush1.xpose.msra.mxu0 0.0
        %551 = vmatprep.subr.mxu0 0.0
        %552 = vmatpush1.xpose.msra.mxu0 0.0
        %553 = vmatprep.subr.mxu0 0.0
        %554 = vmatpush1.xpose.msra.mxu0 0.0
        %555 = vmatprep.subr.mxu0 0.0
        %556 = vmatpush1.xpose.msra.mxu0 0.0
        %557 = vmatprep.subr.mxu0 0.0
        %558 = vmatpush1.xpose.msra.mxu0 0.0
        %559 = vmatprep.subr.mxu0 0.0
        %560 = vmatpush1.xpose.msra.mxu0 0.0
        %561 = vmatprep.subr.mxu0 0.0
        %562 = vmatpush1.xpose.msra.mxu0 0.0
        %563 = vmatprep.subr.mxu0 0.0
        %564 = vmatpush1.xpose.msra.mxu0 0.0
        %565 = vmatprep.subr.mxu0 0.0
        %566 = vmatpush1.xpose.msra.mxu0 0.0
        %567 = vmatprep.subr.mxu0 0.0
        %568 = vmatpush1.xpose.msra.mxu0 0.0
        %569 = vmatprep.subr.mxu0 0.0
        %570 = vmatpush1.xpose.msra.mxu0 0.0
        %571 = vmatprep.subr.mxu0 0.0
        %572 = vmatpush1.xpose.msra.mxu0 0.0
        %573 = vmatprep.subr.mxu0 0.0
        %574 = vmatpush1.xpose.msra.mxu0 0.0
        %575 = vmatprep.subr.mxu0 0.0
        %576 = vmatpush1.xpose.msra.mxu0 0.0
        %577 = vmatprep.subr.mxu0 0.0
        %578 = vmatpush1.xpose.msra.mxu0 0.0
        %579 = vmatprep.subr.mxu0 0.0
        %580 = vmatpush1.xpose.msra.mxu0 0.0
        %581 = vmatprep.subr.mxu0 0.0
        %582 = vmatpush1.xpose.msra.mxu0 0.0
        %583 = vmatprep.subr.mxu0 0.0
        %584 = vmatpush1.xpose.msra.mxu0 0.0
        %585 = vmatprep.subr.mxu0 0.0
        %586 = vmatpush1.xpose.msra.mxu0 0.0
        %587 = vmatprep.subr.mxu0 0.0
        %588 = vmatpush1.xpose.msra.mxu0 0.0
        %589 = vmatprep.subr.mxu0 0.0
        %590 = vmatpush1.xpose.msra.mxu0 0.0
        %591 = vmatprep.subr.mxu0 0.0
        %592 = vmatpush1.xpose.msra.mxu0 0.0
        %593 = vmatprep.subr.mxu0 0.0
        %594 = vmatpush1.xpose.msra.mxu0 0.0
        %595 = vmatprep.mubr.f32.mxu0 0.0
        %596 = vmatmul.mubr.f32.gmra.mrb[0].mxu0 %v527
        %v597 = vpop.f32.mrb[0].mxu0
        %v598 = vadd.f32 0.0, %v597
        %v599 = vpop.f32.mrb[0].mxu0
        %600 = vdwg.mxu0
        %v601 = vsel %vm403, %v598, -inf
        %602 = vmax.xlane.f32.xlu0 %v601
        %v603 = vpop.xlane.xlu0 %602
        %v604 = vsub.f32 %v598, %v603
        %v605 = vmul.f32 %v604, 1.442695
        %v606 = vpow.pop %v605
        %v607 = vsel %vm403, %v606, 0.0
        %608 = vadd.xlane.f32.xlu0 %v607
        %v609 = vpop.xlane.xlu0 %608
        %v610 = vrcp.pop %v609
        %v611 = vmul.f32 %v606, %v610
        %612 = vxpose.xlu0.b32.start [1/16] %v611, 128
        %613 = vxpose.xlu0.b32.cont [2/16] 0.0, 128
        %614 = vxpose.xlu0.b32.cont [3/16] 0.0, 128
        %615 = vxpose.xlu0.b32.cont [4/16] 0.0, 128
        %616 = vxpose.xlu0.b32.cont [5/16] 0.0, 128
        %617 = vxpose.xlu0.b32.cont [6/16] 0.0, 128
        %618 = vxpose.xlu0.b32.cont [7/16] 0.0, 128
        %619 = vxpose.xlu0.b32.cont [8/16] 0.0, 128
        %620 = vxpose.xlu0.b32.cont [9/16] 0.0, 128
        %621 = vxpose.xlu0.b32.cont [10/16] 0.0, 128
        %622 = vxpose.xlu0.b32.cont [11/16] 0.0, 128
        %623 = vxpose.xlu0.b32.cont [12/16] 0.0, 128
        %624 = vxpose.xlu0.b32.cont [13/16] 0.0, 128
        %625 = vxpose.xlu0.b32.cont [14/16] 0.0, 128
        %626 = vxpose.xlu0.b32.cont [15/16] 0.0, 128
        %627 = vxpose.xlu0.b32.end [16/16] 0.0, 128
        %v628 = vpop.trf.xlu0
        %v629 = vpop.trf.xlu0
        %v630 = vpop.trf.xlu0
        %v631 = vpop.trf.xlu0
        %v632 = vpop.trf.xlu0
        %v633 = vpop.trf.xlu0
        %v634 = vpop.trf.xlu0
        %v635 = vpop.trf.xlu0
        %v636 = vpop.trf.xlu0
        %v637 = vpop.trf.xlu0
        %v638 = vpop.trf.xlu0
        %v639 = vpop.trf.xlu0
        %v640 = vpop.trf.xlu0
        %v641 = vpop.trf.xlu0
        %v642 = vpop.trf.xlu0
        %v643 = vpop.trf.xlu0
        %644 = vrot.lane.b32.xlu0 %v320, 92
        %v645 = vpop.permute.xlu0 %644
        %v648 = vsel %vm403, %v628, 0
        %650 = vmatprep.subr.mxu0 0.0
        %651 = vmatpush1.msra.mxu0 %v645
        %652 = vmatprep.subr.mxu0 0.0
        %653 = vmatpush1.msra.mxu0 0.0
        %654 = vmatprep.subr.mxu0 0.0
        %655 = vmatpush1.msra.mxu0 0.0
        %656 = vmatprep.subr.mxu0 0.0
        %657 = vmatpush1.msra.mxu0 0.0
        %658 = vmatprep.subr.mxu0 0.0
        %659 = vmatpush1.msra.mxu0 0.0
        %660 = vmatprep.subr.mxu0 0.0
        %661 = vmatpush1.msra.mxu0 0.0
        %662 = vmatprep.subr.mxu0 0.0
        %663 = vmatpush1.msra.mxu0 0.0
        %664 = vmatprep.subr.mxu0 0.0
        %665 = vmatpush1.msra.mxu0 0.0
        %666 = vmatprep.subr.mxu0 0.0
        %667 = vmatpush1.msra.mxu0 0.0
        %668 = vmatprep.subr.mxu0 0.0
        %669 = vmatpush1.msra.mxu0 0.0
        %670 = vmatprep.subr.mxu0 0.0
        %671 = vmatpush1.msra.mxu0 0.0
        %672 = vmatprep.subr.mxu0 0.0
        %673 = vmatpush1.msra.mxu0 0.0
        %674 = vmatprep.subr.mxu0 0.0
        %675 = vmatpush1.msra.mxu0 0.0
        %676 = vmatprep.subr.mxu0 0.0
        %677 = vmatpush1.msra.mxu0 0.0
        %678 = vmatprep.subr.mxu0 0.0
        %679 = vmatpush1.msra.mxu0 0.0
        %680 = vmatprep.subr.mxu0 0.0
        %681 = vmatpush1.msra.mxu0 0.0
        %682 = vmatprep.subr.mxu0 0.0
        %683 = vmatpush1.msra.mxu0 0.0
        %684 = vmatprep.subr.mxu0 0.0
        %685 = vmatpush1.msra.mxu0 0.0
        %686 = vmatprep.subr.mxu0 0.0
        %687 = vmatpush1.msra.mxu0 0.0
        %688 = vmatprep.subr.mxu0 0.0
        %689 = vmatpush1.msra.mxu0 0.0
        %690 = vmatprep.subr.mxu0 0.0
        %691 = vmatpush1.msra.mxu0 0.0
        %692 = vmatprep.subr.mxu0 0.0
        %693 = vmatpush1.msra.mxu0 0.0
        %694 = vmatprep.subr.mxu0 0.0
        %695 = vmatpush1.msra.mxu0 0.0
        %696 = vmatprep.subr.mxu0 0.0
        %697 = vmatpush1.msra.mxu0 0.0
        %698 = vmatprep.subr.mxu0 0.0
        %699 = vmatpush1.msra.mxu0 0.0
        %700 = vmatprep.subr.mxu0 0.0
        %701 = vmatpush1.msra.mxu0 0.0
        %702 = vmatprep.subr.mxu0 0.0
        %703 = vmatpush1.msra.mxu0 0.0
        %704 = vmatprep.subr.mxu0 0.0
        %705 = vmatpush1.msra.mxu0 0.0
        %706 = vmatprep.subr.mxu0 0.0
        %707 = vmatpush1.msra.mxu0 0.0
        %708 = vmatprep.subr.mxu0 0.0
        %709 = vmatpush1.msra.mxu0 0.0
        %710 = vmatprep.subr.mxu0 0.0
        %711 = vmatpush1.msra.mxu0 0.0
        %712 = vmatprep.subr.mxu0 0.0
        %713 = vmatpush1.msra.mxu0 0.0
        %714 = vmatprep.mubr.f32.mxu0 0.0
        %715 = vmatmul.mubr.f32.gmra.mrb[0].mxu0 %v648
        %v716 = vpop.f32.mrb[0].mxu0
        %v717 = vadd.f32 0.0, %v716
        %v718 = vpop.f32.mrb[0].mxu0
        %719 = vdwg.mxu0
        %720 = vrot.lane.b32.xlu0 %v323, 120
        %v721 = vpop.permute.xlu0 %720
        %722 = vrot.lane.b32.xlu0 %v320, 104
        %v723 = vpop.permute.xlu0 %722
        %v724 = vsel %vm327, %v721, 0
        %v726 = vsel %vm327, %v723, 0
        %728 = vmatprep.subr.mxu0 0.0
        %729 = vmatpush1.xpose.msra.mxu0 %v726
        %730 = vmatprep.subr.mxu0 0.0
        %731 = vmatpush1.xpose.msra.mxu0 0.0
        %732 = vmatprep.subr.mxu0 0.0
        %733 = vmatpush1.xpose.msra.mxu0 0.0
        %734 = vmatprep.subr.mxu0 0.0
        %735 = vmatpush1.xpose.msra.mxu0 0.0
        %736 = vmatprep.subr.mxu0 0.0
        %737 = vmatpush1.xpose.msra.mxu0 0.0
        %738 = vmatprep.subr.mxu0 0.0
        %739 = vmatpush1.xpose.msra.mxu0 0.0
        %740 = vmatprep.subr.mxu0 0.0
        %741 = vmatpush1.xpose.msra.mxu0 0.0
        %742 = vmatprep.subr.mxu0 0.0
        %743 = vmatpush1.xpose.msra.mxu0 0.0
        %744 = vmatprep.subr.mxu0 0.0
        %745 = vmatpush1.xpose.msra.mxu0 0.0
        %746 = vmatprep.subr.mxu0 0.0
        %747 = vmatpush1.xpose.msra.mxu0 0.0
        %748 = vmatprep.subr.mxu0 0.0
        %749 = vmatpush1.xpose.msra.mxu0 0.0
        %750 = vmatprep.subr.mxu0 0.0
        %751 = vmatpush1.xpose.msra.mxu0 0.0
        %752 = vmatprep.subr.mxu0 0.0
        %753 = vmatpush1.xpose.msra.mxu0 0.0
        %754 = vmatprep.subr.mxu0 0.0
        %755 = vmatpush1.xpose.msra.mxu0 0.0
        %756 = vmatprep.subr.mxu0 0.0
        %757 = vmatpush1.xpose.msra.mxu0 0.0
        %758 = vmatprep.subr.mxu0 0.0
        %759 = vmatpush1.xpose.msra.mxu0 0.0
        %760 = vmatprep.subr.mxu0 0.0
        %761 = vmatpush1.xpose.msra.mxu0 0.0
        %762 = vmatprep.subr.mxu0 0.0
        %763 = vmatpush1.xpose.msra.mxu0 0.0
        %764 = vmatprep.subr.mxu0 0.0
        %765 = vmatpush1.xpose.msra.mxu0 0.0
        %766 = vmatprep.subr.mxu0 0.0
        %767 = vmatpush1.xpose.msra.mxu0 0.0
        %768 = vmatprep.subr.mxu0 0.0
        %769 = vmatpush1.xpose.msra.mxu0 0.0
        %770 = vmatprep.subr.mxu0 0.0
        %771 = vmatpush1.xpose.msra.mxu0 0.0
        %772 = vmatprep.subr.mxu0 0.0
        %773 = vmatpush1.xpose.msra.mxu0 0.0
        %774 = vmatprep.subr.mxu0 0.0
        %775 = vmatpush1.xpose.msra.mxu0 0.0
        %776 = vmatprep.subr.mxu0 0.0
        %777 = vmatpush1.xpose.msra.mxu0 0.0
        %778 = vmatprep.subr.mxu0 0.0
        %779 = vmatpush1.xpose.msra.mxu0 0.0
        %780 = vmatprep.subr.mxu0 0.0
        %781 = vmatpush1.xpose.msra.mxu0 0.0
        %782 = vmatprep.subr.mxu0 0.0
        %783 = vmatpush1.xpose.msra.mxu0 0.0
        %784 = vmatprep.subr.mxu0 0.0
        %785 = vmatpush1.xpose.msra.mxu0 0.0
        %786 = vmatprep.subr.mxu0 0.0
        %787 = vmatpush1.xpose.msra.mxu0 0.0
        %788 = vmatprep.subr.mxu0 0.0
        %789 = vmatpush1.xpose.msra.mxu0 0.0
        %790 = vmatprep.subr.mxu0 0.0
        %791 = vmatpush1.xpose.msra.mxu0 0.0
        %792 = vmatprep.mubr.f32.mxu0 0.0
        %793 = vmatmul.mubr.f32.gmra.mrb[0].mxu0 %v724
        %v794 = vpop.f32.mrb[0].mxu0
        %v795 = vadd.f32 0.0, %v794
        %v796 = vpop.f32.mrb[0].mxu0
        %797 = vdwg.mxu0
        %v798 = vsel %vm403, %v795, -inf
        %799 = vmax.xlane.f32.xlu0 %v798
        %v800 = vpop.xlane.xlu0 %799
        %v801 = vsub.f32 %v795, %v800
        %v802 = vmul.f32 %v801, 1.442695
        %v803 = vpow.pop %v802
        %v804 = vsel %vm403, %v803, 0.0
        %805 = vadd.xlane.f32.xlu0 %v804
        %v806 = vpop.xlane.xlu0 %805
        %v807 = vrcp.pop %v806
        %v808 = vmul.f32 %v803, %v807
        %809 = vxpose.xlu0.b32.start [1/16] %v808, 128
        %810 = vxpose.xlu0.b32.cont [2/16] 0.0, 128
        %811 = vxpose.xlu0.b32.cont [3/16] 0.0, 128
        %812 = vxpose.xlu0.b32.cont [4/16] 0.0, 128
        %813 = vxpose.xlu0.b32.cont [5/16] 0.0, 128
        %814 = vxpose.xlu0.b32.cont [6/16] 0.0, 128
        %815 = vxpose.xlu0.b32.cont [7/16] 0.0, 128
        %816 = vxpose.xlu0.b32.cont [8/16] 0.0, 128
        %817 = vxpose.xlu0.b32.cont [9/16] 0.0, 128
        %818 = vxpose.xlu0.b32.cont [10/16] 0.0, 128
        %819 = vxpose.xlu0.b32.cont [11/16] 0.0, 128
        %820 = vxpose.xlu0.b32.cont [12/16] 0.0, 128
        %821 = vxpose.xlu0.b32.cont [13/16] 0.0, 128
        %822 = vxpose.xlu0.b32.cont [14/16] 0.0, 128
        %823 = vxpose.xlu0.b32.cont [15/16] 0.0, 128
        %824 = vxpose.xlu0.b32.end [16/16] 0.0, 128
        %v825 = vpop.trf.xlu0
        %v826 = vpop.trf.xlu0
        %v827 = vpop.trf.xlu0
        %v828 = vpop.trf.xlu0
        %v829 = vpop.trf.xlu0
        %v830 = vpop.trf.xlu0
        %v831 = vpop.trf.xlu0
        %v832 = vpop.trf.xlu0
        %v833 = vpop.trf.xlu0
        %v834 = vpop.trf.xlu0
        %v835 = vpop.trf.xlu0
        %v836 = vpop.trf.xlu0
        %v837 = vpop.trf.xlu0
        %v838 = vpop.trf.xlu0
        %v839 = vpop.trf.xlu0
        %v840 = vpop.trf.xlu0
        %841 = vrot.lane.b32.xlu0 %v320, 88
        %v842 = vpop.permute.xlu0 %841
        %v845 = vsel %vm403, %v825, 0
        %847 = vmatprep.subr.mxu0 0.0
        %848 = vmatpush1.msra.mxu0 %v842
        %849 = vmatprep.subr.mxu0 0.0
        %850 = vmatpush1.msra.mxu0 0.0
        %851 = vmatprep.subr.mxu0 0.0
        %852 = vmatpush1.msra.mxu0 0.0
        %853 = vmatprep.subr.mxu0 0.0
        %854 = vmatpush1.msra.mxu0 0.0
        %855 = vmatprep.subr.mxu0 0.0
        %856 = vmatpush1.msra.mxu0 0.0
        %857 = vmatprep.subr.mxu0 0.0
        %858 = vmatpush1.msra.mxu0 0.0
        %859 = vmatprep.subr.mxu0 0.0
        %860 = vmatpush1.msra.mxu0 0.0
        %861 = vmatprep.subr.mxu0 0.0
        %862 = vmatpush1.msra.mxu0 0.0
        %863 = vmatprep.subr.mxu0 0.0
        %864 = vmatpush1.msra.mxu0 0.0
        %865 = vmatprep.subr.mxu0 0.0
        %866 = vmatpush1.msra.mxu0 0.0
        %867 = vmatprep.subr.mxu0 0.0
        %868 = vmatpush1.msra.mxu0 0.0
        %869 = vmatprep.subr.mxu0 0.0
        %870 = vmatpush1.msra.mxu0 0.0
        %871 = vmatprep.subr.mxu0 0.0
        %872 = vmatpush1.msra.mxu0 0.0
        %873 = vmatprep.subr.mxu0 0.0
        %874 = vmatpush1.msra.mxu0 0.0
        %875 = vmatprep.subr.mxu0 0.0
        %876 = vmatpush1.msra.mxu0 0.0
        %877 = vmatprep.subr.mxu0 0.0
        %878 = vmatpush1.msra.mxu0 0.0
        %879 = vmatprep.subr.mxu0 0.0
        %880 = vmatpush1.msra.mxu0 0.0
        %881 = vmatprep.subr.mxu0 0.0
        %882 = vmatpush1.msra.mxu0 0.0
        %883 = vmatprep.subr.mxu0 0.0
        %884 = vmatpush1.msra.mxu0 0.0
        %885 = vmatprep.subr.mxu0 0.0
        %886 = vmatpush1.msra.mxu0 0.0
        %887 = vmatprep.subr.mxu0 0.0
        %888 = vmatpush1.msra.mxu0 0.0
        %889 = vmatprep.subr.mxu0 0.0
        %890 = vmatpush1.msra.mxu0 0.0
        %891 = vmatprep.subr.mxu0 0.0
        %892 = vmatpush1.msra.mxu0 0.0
        %893 = vmatprep.subr.mxu0 0.0
        %894 = vmatpush1.msra.mxu0 0.0
        %895 = vmatprep.subr.mxu0 0.0
        %896 = vmatpush1.msra.mxu0 0.0
        %897 = vmatprep.subr.mxu0 0.0
        %898 = vmatpush1.msra.mxu0 0.0
        %899 = vmatprep.subr.mxu0 0.0
        %900 = vmatpush1.msra.mxu0 0.0
        %901 = vmatprep.subr.mxu0 0.0
        %902 = vmatpush1.msra.mxu0 0.0
        %903 = vmatprep.subr.mxu0 0.0
        %904 = vmatpush1.msra.mxu0 0.0
        %905 = vmatprep.subr.mxu0 0.0
        %906 = vmatpush1.msra.mxu0 0.0
        %907 = vmatprep.subr.mxu0 0.0
        %908 = vmatpush1.msra.mxu0 0.0
        %909 = vmatprep.subr.mxu0 0.0
        %910 = vmatpush1.msra.mxu0 0.0
        %911 = vmatprep.mubr.f32.mxu0 0.0
        %912 = vmatmul.mubr.f32.gmra.mrb[0].mxu0 %v845
        %v913 = vpop.f32.mrb[0].mxu0
        %v914 = vadd.f32 0.0, %v913
        %v915 = vpop.f32.mrb[0].mxu0
        %916 = vdwg.mxu0
        %917 = vrot.lane.b32.xlu0 %v323, 116
        %v918 = vpop.permute.xlu0 %917
        %919 = vrot.lane.b32.xlu0 %v320, 100
        %v920 = vpop.permute.xlu0 %919
        %v921 = vsel %vm327, %v918, 0
        %v923 = vsel %vm327, %v920, 0
        %925 = vmatprep.subr.mxu0 0.0
        %926 = vmatpush1.xpose.msra.mxu0 %v923
        %927 = vmatprep.subr.mxu0 0.0
        %928 = vmatpush1.xpose.msra.mxu0 0.0
        %929 = vmatprep.subr.mxu0 0.0
        %930 = vmatpush1.xpose.msra.mxu0 0.0
        %931 = vmatprep.subr.mxu0 0.0
        %932 = vmatpush1.xpose.msra.mxu0 0.0
        %933 = vmatprep.subr.mxu0 0.0
        %934 = vmatpush1.xpose.msra.mxu0 0.0
        %935 = vmatprep.subr.mxu0 0.0
        %936 = vmatpush1.xpose.msra.mxu0 0.0
        %937 = vmatprep.subr.mxu0 0.0
        %938 = vmatpush1.xpose.msra.mxu0 0.0
        %939 = vmatprep.subr.mxu0 0.0
        %940 = vmatpush1.xpose.msra.mxu0 0.0
        %941 = vmatprep.subr.mxu0 0.0
        %942 = vmatpush1.xpose.msra.mxu0 0.0
        %943 = vmatprep.subr.mxu0 0.0
        %944 = vmatpush1.xpose.msra.mxu0 0.0
        %945 = vmatprep.subr.mxu0 0.0
        %946 = vmatpush1.xpose.msra.mxu0 0.0
        %947 = vmatprep.subr.mxu0 0.0
        %948 = vmatpush1.xpose.msra.mxu0 0.0
        %949 = vmatprep.subr.mxu0 0.0
        %950 = vmatpush1.xpose.msra.mxu0 0.0
        %951 = vmatprep.subr.mxu0 0.0
        %952 = vmatpush1.xpose.msra.mxu0 0.0
        %953 = vmatprep.subr.mxu0 0.0
        %954 = vmatpush1.xpose.msra.mxu0 0.0
        %955 = vmatprep.subr.mxu0 0.0
        %956 = vmatpush1.xpose.msra.mxu0 0.0
        %957 = vmatprep.subr.mxu0 0.0
        %958 = vmatpush1.xpose.msra.mxu0 0.0
        %959 = vmatprep.subr.mxu0 0.0
        %960 = vmatpush1.xpose.msra.mxu0 0.0
        %961 = vmatprep.subr.mxu0 0.0
        %962 = vmatpush1.xpose.msra.mxu0 0.0
        %963 = vmatprep.subr.mxu0 0.0
        %964 = vmatpush1.xpose.msra.mxu0 0.0
        %965 = vmatprep.subr.mxu0 0.0
        %966 = vmatpush1.xpose.msra.mxu0 0.0
        %967 = vmatprep.subr.mxu0 0.0
        %968 = vmatpush1.xpose.msra.mxu0 0.0
        %969 = vmatprep.subr.mxu0 0.0
        %970 = vmatpush1.xpose.msra.mxu0 0.0
        %971 = vmatprep.subr.mxu0 0.0
        %972 = vmatpush1.xpose.msra.mxu0 0.0
        %973 = vmatprep.subr.mxu0 0.0
        %974 = vmatpush1.xpose.msra.mxu0 0.0
        %975 = vmatprep.subr.mxu0 0.0
        %976 = vmatpush1.xpose.msra.mxu0 0.0
        %977 = vmatprep.subr.mxu0 0.0
        %978 = vmatpush1.xpose.msra.mxu0 0.0
        %979 = vmatprep.subr.mxu0 0.0
        %980 = vmatpush1.xpose.msra.mxu0 0.0
        %981 = vmatprep.subr.mxu0 0.0
        %982 = vmatpush1.xpose.msra.mxu0 0.0
        %983 = vmatprep.subr.mxu0 0.0
        %984 = vmatpush1.xpose.msra.mxu0 0.0
        %985 = vmatprep.subr.mxu0 0.0
        %986 = vmatpush1.xpose.msra.mxu0 0.0
        %987 = vmatprep.subr.mxu0 0.0
        %988 = vmatpush1.xpose.msra.mxu0 0.0
        %989 = vmatprep.mubr.f32.mxu0 0.0
        %990 = vmatmul.mubr.f32.gmra.mrb[0].mxu0 %v921
        %v991 = vpop.f32.mrb[0].mxu0
        %v992 = vadd.f32 0.0, %v991
        %v993 = vpop.f32.mrb[0].mxu0
        %994 = vdwg.mxu0
        %v995 = vsel %vm403, %v992, -inf
        %996 = vmax.xlane.f32.xlu0 %v995
        %v997 = vpop.xlane.xlu0 %996
        %v998 = vsub.f32 %v992, %v997
        %v999 = vmul.f32 %v998, 1.442695
        %v1000 = vpow.pop %v999
        %v1001 = vsel %vm403, %v1000, 0.0
        %1002 = vadd.xlane.f32.xlu0 %v1001
        %v1003 = vpop.xlane.xlu0 %1002
        %v1004 = vrcp.pop %v1003
        %v1005 = vmul.f32 %v1000, %v1004
        %1006 = vxpose.xlu0.b32.start [1/16] %v1005, 128
        %1007 = vxpose.xlu0.b32.cont [2/16] 0.0, 128
        %1008 = vxpose.xlu0.b32.cont [3/16] 0.0, 128
        %1009 = vxpose.xlu0.b32.cont [4/16] 0.0, 128
        %1010 = vxpose.xlu0.b32.cont [5/16] 0.0, 128
        %1011 = vxpose.xlu0.b32.cont [6/16] 0.0, 128
        %1012 = vxpose.xlu0.b32.cont [7/16] 0.0, 128
        %1013 = vxpose.xlu0.b32.cont [8/16] 0.0, 128
        %1014 = vxpose.xlu0.b32.cont [9/16] 0.0, 128
        %1015 = vxpose.xlu0.b32.cont [10/16] 0.0, 128
        %1016 = vxpose.xlu0.b32.cont [11/16] 0.0, 128
        %1017 = vxpose.xlu0.b32.cont [12/16] 0.0, 128
        %1018 = vxpose.xlu0.b32.cont [13/16] 0.0, 128
        %1019 = vxpose.xlu0.b32.cont [14/16] 0.0, 128
        %1020 = vxpose.xlu0.b32.cont [15/16] 0.0, 128
        %1021 = vxpose.xlu0.b32.end [16/16] 0.0, 128
        %v1022 = vpop.trf.xlu0
        %v1023 = vpop.trf.xlu0
        %v1024 = vpop.trf.xlu0
        %v1025 = vpop.trf.xlu0
        %v1026 = vpop.trf.xlu0
        %v1027 = vpop.trf.xlu0
        %v1028 = vpop.trf.xlu0
        %v1029 = vpop.trf.xlu0
        %v1030 = vpop.trf.xlu0
        %v1031 = vpop.trf.xlu0
        %v1032 = vpop.trf.xlu0
        %v1033 = vpop.trf.xlu0
        %v1034 = vpop.trf.xlu0
        %v1035 = vpop.trf.xlu0
        %v1036 = vpop.trf.xlu0
        %v1037 = vpop.trf.xlu0
        %1038 = vrot.lane.b32.xlu0 %v320, 84
        %v1039 = vpop.permute.xlu0 %1038
        %v1042 = vsel %vm403, %v1022, 0
        %1044 = vmatprep.subr.mxu0 0.0
        %1045 = vmatpush1.msra.mxu0 %v1039
        %1046 = vmatprep.subr.mxu0 0.0
        %1047 = vmatpush1.msra.mxu0 0.0
        %1048 = vmatprep.subr.mxu0 0.0
        %1049 = vmatpush1.msra.mxu0 0.0
        %1050 = vmatprep.subr.mxu0 0.0
        %1051 = vmatpush1.msra.mxu0 0.0
        %1052 = vmatprep.subr.mxu0 0.0
        %1053 = vmatpush1.msra.mxu0 0.0
        %1054 = vmatprep.subr.mxu0 0.0
        %1055 = vmatpush1.msra.mxu0 0.0
        %1056 = vmatprep.subr.mxu0 0.0
        %1057 = vmatpush1.msra.mxu0 0.0
        %1058 = vmatprep.subr.mxu0 0.0
        %1059 = vmatpush1.msra.mxu0 0.0
        %1060 = vmatprep.subr.mxu0 0.0
        %1061 = vmatpush1.msra.mxu0 0.0
        %1062 = vmatprep.subr.mxu0 0.0
        %1063 = vmatpush1.msra.mxu0 0.0
        %1064 = vmatprep.subr.mxu0 0.0
        %1065 = vmatpush1.msra.mxu0 0.0
        %1066 = vmatprep.subr.mxu0 0.0
        %1067 = vmatpush1.msra.mxu0 0.0
        %1068 = vmatprep.subr.mxu0 0.0
        %1069 = vmatpush1.msra.mxu0 0.0
        %1070 = vmatprep.subr.mxu0 0.0
        %1071 = vmatpush1.msra.mxu0 0.0
        %1072 = vmatprep.subr.mxu0 0.0
        %1073 = vmatpush1.msra.mxu0 0.0
        %1074 = vmatprep.subr.mxu0 0.0
        %1075 = vmatpush1.msra.mxu0 0.0
        %1076 = vmatprep.subr.mxu0 0.0
        %1077 = vmatpush1.msra.mxu0 0.0
        %1078 = vmatprep.subr.mxu0 0.0
        %1079 = vmatpush1.msra.mxu0 0.0
        %1080 = vmatprep.subr.mxu0 0.0
        %1081 = vmatpush1.msra.mxu0 0.0
        %1082 = vmatprep.subr.mxu0 0.0
        %1083 = vmatpush1.msra.mxu0 0.0
        %1084 = vmatprep.subr.mxu0 0.0
        %1085 = vmatpush1.msra.mxu0 0.0
        %1086 = vmatprep.subr.mxu0 0.0
        %1087 = vmatpush1.msra.mxu0 0.0
        %1088 = vmatprep.subr.mxu0 0.0
        %1089 = vmatpush1.msra.mxu0 0.0
        %1090 = vmatprep.subr.mxu0 0.0
        %1091 = vmatpush1.msra.mxu0 0.0
        %1092 = vmatprep.subr.mxu0 0.0
        %1093 = vmatpush1.msra.mxu0 0.0
        %1094 = vmatprep.subr.mxu0 0.0
        %1095 = vmatpush1.msra.mxu0 0.0
        %1096 = vmatprep.subr.mxu0 0.0
        %1097 = vmatpush1.msra.mxu0 0.0
        %1098 = vmatprep.subr.mxu0 0.0
        %1099 = vmatpush1.msra.mxu0 0.0
        %1100 = vmatprep.subr.mxu0 0.0
        %1101 = vmatpush1.msra.mxu0 0.0
        %1102 = vmatprep.subr.mxu0 0.0
        %1103 = vmatpush1.msra.mxu0 0.0
        %1104 = vmatprep.subr.mxu0 0.0
        %1105 = vmatpush1.msra.mxu0 0.0
        %1106 = vmatprep.subr.mxu0 0.0
        %1107 = vmatpush1.msra.mxu0 0.0
        %1108 = vmatprep.mubr.f32.mxu0 0.0
        %1109 = vmatmul.mubr.f32.gmra.mrb[0].mxu0 %v1042
        %v1110 = vpop.f32.mrb[0].mxu0
        %v1111 = vadd.f32 0.0, %v1110
        %v1112 = vpop.f32.mrb[0].mxu0
        %1113 = vdwg.mxu0
        %1114 = vst.msk [vmem:[%s231] sm:$0xff] %vm403, %v431
        %1115 = vst.msk [vmem:[%s231 + $0x8] sm:$0xff] %vm403, %v628
        %1116 = vst.msk [vmem:[%s231 + $0x10] sm:$0xff] %vm403, %v825
        %1117 = vst.msk [vmem:[%s231 + $0x18] sm:$0xff] %vm403, %v1022
        %1119 = vrot.lane.b32.xlu0 %v717, 4
        %v1120 = vpop.permute.xlu0 %1119
        %1123 = vrot.lane.b32.xlu0 %v914, 8
        %v1124 = vpop.permute.xlu0 %1123
        %1127 = vrot.lane.b32.xlu0 %v1111, 12
        %v1128 = vpop.permute.xlu0 %1127
        %v1130 = vsel %vm327, %v520, %v1120
        %v1131 = vsel %vm403, %v1130, %v1124
        %vm1132 = vcmask 97280
        %v1133 = vsel %vm1132, %v1131, %v1128
        %1134 = vst.msk [vmem:[%s238] sm:$0xff] %vm249, %v1133
        %s1135 = sand.u32 %s102, 1
        %s1136 = scalar_lea.sflag [#allocation4], %s1135
        %s1137 = sand.u32 %s102, 1
        %s1138 = smul.addr %s1137, 32
        %s1139 = scalar_lea.vmem [#allocation7], %s1138
        %s1140 = sand.u32 %s128, 1
        %s1141 = scalar_lea.sflag [#allocation9], %s1140
        %s1142 = sand.u32 %s128, 1
        %s1143 = smul.addr %s1142, 8
        %s1144 = scalar_lea.vmem [#allocation8], %s1143
        // Predicated region
        $region41: #{tpu_custom_call.1} parent=31 // pred_check
          %p1145 = pneg %p112
        $region42: #{tpu_custom_call.1} parent=31 // pred_check_branch
          %1147 = sbr.rel (%p1145) target = $region44
        $region43: #{tpu_custom_call.1} parent=31 // pred_region
          %s1149 = ssub.s32 512, 512
          %1150 = vsyncadd %s1136, %s1149
          %s1151 = smul.addr %s26, 4
          %s1152 = smul.addr %s1151, 128
          %s1153 = scalar_lea.hbm %s3, %s1152
          %s1154 = sshll.u32 %s1139, 4
          %s1155 = int_to_ptr.vmem [resolvable:$true] %s1154
          %1160 = dma.vmem_to_hbm [thread:$0]  %s1155, 512, %s1153, %s1136, 128, 128, 8
        $region44: #{tpu_custom_call.1} parent=31 // pred_fallthru
          _
        // Predicated region
        $region45: #{tpu_custom_call.1} parent=31 // pred_check
          %p1161 = pneg %p138
        $region46: #{tpu_custom_call.1} parent=31 // pred_check_branch
          %1163 = sbr.rel (%p1161) target = $region48
        $region47: #{tpu_custom_call.1} parent=31 // pred_region
          %s1165 = ssub.s32 128, 128
          %1166 = vsyncadd %s1141, %s1165
          %s1167 = smul.addr %s26, 128
          %s1168 = scalar_lea.hbm %s4, %s1167
          %s1170 = sshll.u32 %s1144, 4
          %s1171 = int_to_ptr.vmem [resolvable:$true] %s1170
          %1173 = dma.vmem_to_hbm [thread:$0]  %s1171, 128, %s1168, %s1141
        $region48: #{tpu_custom_call.1} parent=31 // pred_fallthru
          _
      $region32: #{tpu_custom_call.1} parent=5 // pred_fallthru
        _
      %p1174 = scmp.le.s32.totalorder 2, %s21
      // Predicated region
      $region49: #{tpu_custom_call.1} parent=5 // pred_check
        %p1175 = pneg %p1174
      $region50: #{tpu_custom_call.1} parent=5 // pred_check_branch
        %1177 = sbr.rel (%p1175) target = $region52
      $region51: #{tpu_custom_call.1} parent=5 // pred_region
        %s1178 = ssub.s32 %s21, 2
        // Predicated region
        $region53: #{tpu_custom_call.1} parent=51 // pred_check
          %p1179 = pneg %p118
        $region54: #{tpu_custom_call.1} parent=51 // pred_check_branch
          %1181 = sbr.rel (%p1179) target = $region56
        $region55: #{tpu_custom_call.1} parent=51 // pred_region
          %s1182 = sand.u32 %s103, 1
          %s1183 = scalar_lea.sflag [#allocation4], %s1182
          %s1184 = sand.u32 %s103, 1
          %s1185 = smul.addr %s1184, 32
          %s1186 = scalar_lea.vmem [#allocation7], %s1185
          %1187 = dma.done %s1183, 512
        $region56: #{tpu_custom_call.1} parent=51 // pred_fallthru
          _
        // Predicated region
        $region57: #{tpu_custom_call.1} parent=51 // pred_check
          %p1188 = pneg %p144
        $region58: #{tpu_custom_call.1} parent=51 // pred_check_branch
          %1190 = sbr.rel (%p1188) target = $region60
        $region59: #{tpu_custom_call.1} parent=51 // pred_region
          %s1191 = sand.u32 %s129, 1
          %s1192 = scalar_lea.sflag [#allocation9], %s1191
          %s1193 = sand.u32 %s129, 1
          %s1194 = smul.addr %s1193, 8
          %s1195 = scalar_lea.vmem [#allocation8], %s1194
          %1196 = dma.done %s1192, 128
        $region60: #{tpu_custom_call.1} parent=51 // pred_fallthru
          _
      $region52: #{tpu_custom_call.1} parent=5 // pred_fallthru
        _
    $region6: #{tpu_custom_call.1} parent=1 // loop_footer
      %s25 = sadd.s32 1, %s21
    $region7: #{tpu_custom_call.1} parent=1 // loop_footer_branch
      %20 = sbr.rel target = $region3
    $region8: #{tpu_custom_call.1} parent=1 // loop_exit
      _
    %1197 = vsyncpa [#allocation3], 1
    %s1198 = scalar_lea.sflag [#allocation3], 1
    %1199 = vsyncpa %s1198, 1
    %1200 = vsyncpa [#allocation6], 1
    %1201 = vsyncpa [#allocation4], 1
    %s1202 = scalar_lea.sflag [#allocation4], 1
    %1203 = vsyncpa %s1202, 1
    %1204 = vsyncpa [#allocation9], 1
    %s1205 = scalar_lea.sflag [#allocation9], 1
    %1206 = vsyncpa %s1205, 1

</llo_original>
